<compile_context>
chip_gen: v5e
topology: v5e:2x2
jax: 0.10.0
libtpu: 0.0.40
codegen_flags: <defaults>
</compile_context>

<pallas_src>
import jax
import jax.numpy as jnp
from jax.experimental import pallas as pl
from jax.experimental.pallas import tpu as pltpu


def _mlp_kernel(x_ref, w1_ref, b1_ref, w2_ref, b2_ref, w3t_ref, b3_ref, o_ref):
    x = x_ref[...]                                               # [D_in, TB] bf16
    # Layer 1 (MXU, bf16 operands, f32 accumulate): [H, D_in] @ [D_in, TB]
    # TODO(synk): verify MXU operand orientation in the bundle dump; if the big
    # x/h tiles end up stationary, switch to explicit pltpu.matmul_push_rhs /
    # matmul_acc_lhs holding the tiny weight matrices stationary across the tile.
    h1 = jnp.dot(w1_ref[...], x, preferred_element_type=jnp.float32)
    h1 = jnp.maximum(h1 + b1_ref[...], 0.0)                      # f32 bias + ReLU (VPU)
    # Layer 2 (MXU): [H, H] @ [H, TB]
    h2 = jnp.dot(w2_ref[...], h1.astype(jnp.bfloat16),
                 preferred_element_type=jnp.float32)
    h2 = jnp.maximum(h2 + b2_ref[...], 0.0)                      # [H, TB] f32
    # Layer 3 (1 x H output row): VPU multiply + sublane reduction keeps this
    # nearly-empty matmul off the MXU (it was ~45% of MXU pushes for <1% work).
    out = jnp.sum(h2 * w3t_ref[...], axis=0, keepdims=True) + b3_ref[...]
    o_ref[...] = out.astype(o_ref.dtype)


def _choose_batch_tile(B, d_in, hidden, block_b, vmem_budget_bytes=20 << 20):
    """Lane-tile size (multiple of 128) and padded batch, VMEM-aware + balanced."""
    b128 = pl.cdiv(B, 128) * 128
    # Rough per-lane VMEM footprint of one whole-tile step:
    #   h1 (f32 + bf16 copy) + h2 (f32) + one elementwise temp ~= hidden*14 bytes,
    #   plus 2x double-buffered x tile (bf16) and 2x out tile (f32).
    per_lane = hidden * 14 + 4 * d_in + 8
    tb_cap = max(128, (vmem_budget_bytes // per_lane) // 128 * 128)
    tb_req = max(128, min(block_b, tb_cap))
    nsteps = pl.cdiv(b128, tb_req)
    if nsteps < 2 and b128 > 128:
        nsteps = 2                       # keep both v7x TensorCores busy
    tb = pl.cdiv(b128 // 128, nsteps) * 128
    return tb, nsteps * tb


def wgail_discriminator_forward(x, params, block_b=8192):
    """x: [B, obs_dim + action_dim] float32. Returns [B] float32 (== output.view(-1)).

    params: (w1, b1, w2, b2, w3, b3) with wk in PyTorch [out, in] layout and
    bk shaped [out, 1].
    """
    w1, b1, w2, b2, w3, b3 = params
    B, d_in = x.shape
    hidden = w1.shape[0]

    tb, b_pad = _choose_batch_tile(B, d_in, hidden, block_b)
    grid = (b_pad // tb,)

    # bf16 operands for the MXU layers (halves x HBM traffic; full MXU rate on
    # v6e/v7x). Layer-3 weight is used on the VPU, so it stays f32, pre-transposed.
    x_t = x.astype(jnp.bfloat16).T                               # [D_in, B]
    if b_pad != B:
        x_t = jnp.pad(x_t, ((0, 0), (0, b_pad - B)))
    w1b = w1.astype(jnp.bfloat16)
    w2b = w2.astype(jnp.bfloat16)
    w3t = w3.astype(jnp.float32).T                               # [H, 1]

    # Weights/biases: constant index_map -> DMA'd once, resident across the grid.
    # (pipeline_mode=pl.Buffered(1) would shave the second buffer copy; skipped
    # as pure hygiene — footprint is a few KiB.)
    resident = lambda a: pl.BlockSpec(a.shape, lambda i: (0, 0))

    out = pl.pallas_call(
        _mlp_kernel,
        out_shape=jax.ShapeDtypeStruct((1, b_pad), jnp.float32),
        grid=grid,
        in_specs=[
            pl.BlockSpec((d_in, tb), lambda i: (0, i)),          # x tile (pipelined)
            resident(w1b), resident(b1),
            resident(w2b), resident(b2),
            resident(w3t), resident(b3),
        ],
        out_specs=pl.BlockSpec((1, tb), lambda i: (0, i)),
        compiler_params=pltpu.CompilerParams(
            dimension_semantics=("parallel",),                   # megacore on v7x
            vmem_limit_bytes=32 * 1024 * 1024,
        ),
    )(x_t, w1b, b1, w2b, b2, w3t, b3)

    return out[0, :B]


def _orthogonal(key, shape, dtype=jnp.float32):
    """Deterministic orthogonal init (mimics nn.init.orthogonal_)."""
    rows, cols = shape
    n = max(rows, cols)
    a = jax.random.normal(key, (n, n), dtype=jnp.float32)
    q, r = jnp.linalg.qr(a)
    q = q * jnp.sign(jnp.diag(r))
    return q[:rows, :cols].astype(dtype)


def init_params(key, in_dim, net_arch, out_dim):
    """Weights stored in PyTorch [out, in] layout; biases as [out, 1]."""
    dims = [in_dim] + list(net_arch) + [out_dim]
    params = []
    for i in range(len(dims) - 1):
        key, wk, bk = jax.random.split(key, 3)
        w = _orthogonal(wk, (dims[i + 1], dims[i]))              # [out, in]
        bound = 1.0 / jnp.sqrt(jnp.asarray(dims[i], jnp.float32))
        b = jax.random.uniform(bk, (dims[i + 1], 1), jnp.float32, -bound, bound)
        params.extend([w, b])
    return tuple(params)


if __name__ == "__main__":
    # Discrete action space case: e.g. obs shape (4,), Discrete(4)
    obs_dim = 4
    action_dim = 4
    net_arch = [64, 64]
    in_dim = obs_dim + action_dim   # 8
    batch = 8

    key = jax.random.PRNGKey(0)
    k_params, k_x = jax.random.split(key)
    params = init_params(k_params, in_dim, net_arch, 1)
    x = jax.random.normal(k_x, (batch, in_dim), jnp.float32)

    fwd = jax.jit(wgail_discriminator_forward)
    y = fwd(x, params)
    jax.block_until_ready(y)
    assert y.shape == (batch,), y.shape

    # Pure-JAX reference with the same bf16 operand casting (f32 accumulation).
    w1, b1, w2, b2, w3, b3 = params
    xb = x.astype(jnp.bfloat16)
    h1 = jnp.maximum(jnp.dot(xb, w1.astype(jnp.bfloat16).T,
                             preferred_element_type=jnp.float32) + b1.T, 0.0)
    h2 = jnp.maximum(jnp.dot(h1.astype(jnp.bfloat16), w2.astype(jnp.bfloat16).T,
                             preferred_element_type=jnp.float32) + b2.T, 0.0)
    ref = (h2 @ w3.T + b3.T).reshape(-1)
    assert jnp.allclose(y, ref, atol=2e-4, rtol=2e-4), (y, ref)

    print("KERNEL_OK")
</pallas_src>

<mosaic_0001>
module attributes {stable_mosaic.version = 11 : i64} {
  func.func @_mlp_kernel(%arg0: i32, %arg1: memref<8x128xbf16, #tpu.memory_space<vmem>>, %arg2: memref<64x8xbf16, #tpu.memory_space<vmem>>, %arg3: memref<64x1xf32, #tpu.memory_space<vmem>>, %arg4: memref<64x64xbf16, #tpu.memory_space<vmem>>, %arg5: memref<64x1xf32, #tpu.memory_space<vmem>>, %arg6: memref<64x1xf32, #tpu.memory_space<vmem>>, %arg7: memref<1x1xf32, #tpu.memory_space<vmem>>, %arg8: memref<1x128xf32, #tpu.memory_space<vmem>>) attributes {dimension_semantics = [#tpu.dimension_semantics<parallel>], iteration_bounds = array<i64: 1>, scalar_prefetch = 0 : i64, scratch_operands = 0 : i64, tpu.core_type = #tpu.core_type<tc>, window_params = [{transform_indices = @transform_0, window_bounds = array<i64: 8, 128>}, {pipeline_mode = #tpu.pipeline_mode<synchronous>, transform_indices = @transform_1, window_bounds = array<i64: 64, 8>}, {pipeline_mode = #tpu.pipeline_mode<synchronous>, transform_indices = @transform_2, window_bounds = array<i64: 64, 1>}, {pipeline_mode = #tpu.pipeline_mode<synchronous>, transform_indices = @transform_3, window_bounds = array<i64: 64, 64>}, {pipeline_mode = #tpu.pipeline_mode<synchronous>, transform_indices = @transform_4, window_bounds = array<i64: 64, 1>}, {pipeline_mode = #tpu.pipeline_mode<synchronous>, transform_indices = @transform_5, window_bounds = array<i64: 64, 1>}, {pipeline_mode = #tpu.pipeline_mode<synchronous>, transform_indices = @transform_6, window_bounds = array<i64: 1, 1>}, {transform_indices = @transform_7, window_bounds = array<i64: 1, 128>}]} {
    %c0 = arith.constant 0 : index
    %c0_0 = arith.constant 0 : index
    %0 = vector.load %arg1[%c0, %c0_0] : memref<8x128xbf16, #tpu.memory_space<vmem>>, vector<8x128xbf16>
    %c0_1 = arith.constant 0 : index
    %c0_2 = arith.constant 0 : index
    %1 = vector.load %arg2[%c0_1, %c0_2] : memref<64x8xbf16, #tpu.memory_space<vmem>>, vector<64x8xbf16>
    %cst = arith.constant dense<0.000000e+00> : vector<64x128xf32>
    %2 = tpu.matmul %1, %0, %cst {dimension_numbers = #tpu.dot_dimension_numbers<[1], [0], [0], [1], [0, 0, 1, 1], [], []>} : vector<64x8xbf16>, vector<8x128xbf16>, vector<64x128xf32> -> vector<64x128xf32>
    %c0_3 = arith.constant 0 : index
    %c0_4 = arith.constant 0 : index
    %3 = vector.load %arg3[%c0_3, %c0_4] : memref<64x1xf32, #tpu.memory_space<vmem>>, vector<64x1xf32>
    %4 = vector.broadcast %3 : vector<64x1xf32> to vector<64x128xf32>
    %5 = arith.addf %2, %4 : vector<64x128xf32>
    %cst_5 = arith.constant 0.000000e+00 : f32
    %6 = vector.broadcast %cst_5 : f32 to vector<64x128xf32>
    %7 = arith.maximumf %5, %6 : vector<64x128xf32>
    %c0_6 = arith.constant 0 : index
    %c0_7 = arith.constant 0 : index
    %8 = vector.load %arg4[%c0_6, %c0_7] : memref<64x64xbf16, #tpu.memory_space<vmem>>, vector<64x64xbf16>
    %9 = arith.truncf %7 : vector<64x128xf32> to vector<64x128xbf16>
    %cst_8 = arith.constant dense<0.000000e+00> : vector<64x128xf32>
    %10 = tpu.matmul %8, %9, %cst_8 {dimension_numbers = #tpu.dot_dimension_numbers<[1], [0], [0], [1], [0, 0, 1, 1], [], []>} : vector<64x64xbf16>, vector<64x128xbf16>, vector<64x128xf32> -> vector<64x128xf32>
    %c0_9 = arith.constant 0 : index
    %c0_10 = arith.constant 0 : index
    %11 = vector.load %arg5[%c0_9, %c0_10] : memref<64x1xf32, #tpu.memory_space<vmem>>, vector<64x1xf32>
    %12 = vector.broadcast %11 : vector<64x1xf32> to vector<64x128xf32>
    %13 = arith.addf %10, %12 : vector<64x128xf32>
    %cst_11 = arith.constant 0.000000e+00 : f32
    %14 = vector.broadcast %cst_11 : f32 to vector<64x128xf32>
    %15 = arith.maximumf %13, %14 : vector<64x128xf32>
    %c0_12 = arith.constant 0 : index
    %c0_13 = arith.constant 0 : index
    %16 = vector.load %arg6[%c0_12, %c0_13] : memref<64x1xf32, #tpu.memory_space<vmem>>, vector<64x1xf32>
    %17 = vector.broadcast %16 : vector<64x1xf32> to vector<64x128xf32>
    %18 = arith.mulf %15, %17 : vector<64x128xf32>
    %cst_14 = arith.constant dense<0.000000e+00> : vector<128xf32>
    %19 = vector.multi_reduction <add>, %18, %cst_14 [0] : vector<64x128xf32> to vector<128xf32>
    %20 = vector.shape_cast %19 : vector<128xf32> to vector<1x128xf32>
    %c0_15 = arith.constant 0 : index
    %c0_16 = arith.constant 0 : index
    %21 = vector.load %arg7[%c0_15, %c0_16] : memref<1x1xf32, #tpu.memory_space<vmem>>, vector<1x1xf32>
    %22 = vector.broadcast %21 : vector<1x1xf32> to vector<1x128xf32>
    %23 = arith.addf %20, %22 : vector<1x128xf32>
    %c0_17 = arith.constant 0 : index
    %c0_18 = arith.constant 0 : index
    %24 = vector.load %arg8[%c0_17, %c0_18] : memref<1x128xf32, #tpu.memory_space<vmem>>, vector<1x128xf32>
    tpu.vector_store %arg8[%c0_17, %c0_18], %23 {strides = array<i32>} : memref<1x128xf32, #tpu.memory_space<vmem>>, vector<1x128xf32>,
    return
  }
  func.func @transform_0(%arg0: i32) -> (i32, i32) {
    %c0_i32 = arith.constant 0 : i32
    %c0_i32_0 = arith.constant 0 : i32
    return %c0_i32, %arg0 : i32, i32
  }
  func.func @transform_1(%arg0: i32) -> (i32, i32) {
    %c0_i32 = arith.constant 0 : i32
    %c0_i32_0 = arith.constant 0 : i32
    %c0_i32_1 = arith.constant 0 : i32
    return %c0_i32, %c0_i32_0 : i32, i32
  }
  func.func @transform_2(%arg0: i32) -> (i32, i32) {
    %c0_i32 = arith.constant 0 : i32
    %c0_i32_0 = arith.constant 0 : i32
    %c0_i32_1 = arith.constant 0 : i32
    return %c0_i32, %c0_i32_0 : i32, i32
  }
  func.func @transform_3(%arg0: i32) -> (i32, i32) {
    %c0_i32 = arith.constant 0 : i32
    %c0_i32_0 = arith.constant 0 : i32
    %c0_i32_1 = arith.constant 0 : i32
    return %c0_i32, %c0_i32_0 : i32, i32
  }
  func.func @transform_4(%arg0: i32) -> (i32, i32) {
    %c0_i32 = arith.constant 0 : i32
    %c0_i32_0 = arith.constant 0 : i32
    %c0_i32_1 = arith.constant 0 : i32
    return %c0_i32, %c0_i32_0 : i32, i32
  }
  func.func @transform_5(%arg0: i32) -> (i32, i32) {
    %c0_i32 = arith.constant 0 : i32
    %c0_i32_0 = arith.constant 0 : i32
    %c0_i32_1 = arith.constant 0 : i32
    return %c0_i32, %c0_i32_0 : i32, i32
  }
  func.func @transform_6(%arg0: i32) -> (i32, i32) {
    %c0_i32 = arith.constant 0 : i32
    %c0_i32_0 = arith.constant 0 : i32
    %c0_i32_1 = arith.constant 0 : i32
    return %c0_i32, %c0_i32_0 : i32, i32
  }
  func.func @transform_7(%arg0: i32) -> (i32, i32) {
    %c0_i32 = arith.constant 0 : i32
    %c0_i32_0 = arith.constant 0 : i32
    return %c0_i32, %arg0 : i32, i32
  }
}

</mosaic_0001>

<llo_original>
// kernel: wgail_discriminator_forward.1
$region0: #{wgail_discriminator_forward.1}
  #allocation0 [shape = 'u32[]', space=smem, size = 0x4, offset = 0x4, fixed_abs, tag = 'smem constant byte address 0x4 - core index']
  #allocation1 [shape = 'u32[72,128]{1,0:T(1,128)}', space=vmem, size = 0x9000, scoped, tag = 'internal scratch']
  #allocation2 [shape = 'f32[1,1]{1,0:T(1,128)S(1)}', space=vmem, size = 0x200, scoped, tag = 'scoped memory for wgail_discriminator_forward.1']
  %s0 = inlined_call_operand.vmem [shape: bf16[8,128], index: 0, kind: input, shape index: {}]
  %s1 = inlined_call_operand.vmem [shape: bf16[64,8], index: 1, kind: input, shape index: {}]
  %s2 = inlined_call_operand.vmem [shape: f32[64,1], index: 2, kind: input, shape index: {}]
  %s3 = inlined_call_operand.vmem [shape: bf16[64,64], index: 3, kind: input, shape index: {}]
  %s4 = inlined_call_operand.vmem [shape: f32[64,1], index: 4, kind: input, shape index: {}]
  %s5 = inlined_call_operand.vmem [shape: f32[64,1], index: 5, kind: input, shape index: {}]
  %s6 = inlined_call_operand.<no memory space> [shape: f32[1,1], index: 6, kind: input, shape index: {}]
  %s7 = inlined_call_operand.vmem [shape: f32[1,128], index: 7, kind: output, shape index: {}]
  %s8 = sld [smem:[#allocation0]]
  $region38: #{wgail_discriminator_forward.1} parent=0
    _
  %s10 = ssub.s32 1, %s8
  %s11 = scalar_select 0, %s10, %s8
  %v12 = vstv %s6
  %13 = vst [vmem:[#allocation2] sm:$0x1] %v12
  // Predicated region
  $region2: #{wgail_discriminator_forward.1} parent=0 // pred_check
    _
  $region3: #{wgail_discriminator_forward.1} parent=0 // pred_check_branch
    %15 = sbr.rel (0) target = $region5
  $region4: #{wgail_discriminator_forward.1} parent=0 // pred_region
    _
  $region5: #{wgail_discriminator_forward.1} parent=0 // pred_fallthru
    _
  // Predicated region
  $region6: #{wgail_discriminator_forward.1} parent=0 // pred_check
    _
  $region7: #{wgail_discriminator_forward.1} parent=0 // pred_check_branch
    %17 = sbr.rel (0) target = $region9
  $region8: #{wgail_discriminator_forward.1} parent=0 // pred_region
    _
  $region9: #{wgail_discriminator_forward.1} parent=0 // pred_fallthru
    _
  // Predicated region
  $region10: #{wgail_discriminator_forward.1} parent=0 // pred_check
    _
  $region11: #{wgail_discriminator_forward.1} parent=0 // pred_check_branch
    %19 = sbr.rel (0) target = $region13
  $region12: #{wgail_discriminator_forward.1} parent=0 // pred_region
    _
  $region13: #{wgail_discriminator_forward.1} parent=0 // pred_fallthru
    _
  // Predicated region
  $region14: #{wgail_discriminator_forward.1} parent=0 // pred_check
    _
  $region15: #{wgail_discriminator_forward.1} parent=0 // pred_check_branch
    %21 = sbr.rel (0) target = $region17
  $region16: #{wgail_discriminator_forward.1} parent=0 // pred_region
    _
  $region17: #{wgail_discriminator_forward.1} parent=0 // pred_fallthru
    _
  // Predicated region
  $region18: #{wgail_discriminator_forward.1} parent=0 // pred_check
    _
  $region19: #{wgail_discriminator_forward.1} parent=0 // pred_check_branch
    %23 = sbr.rel (0) target = $region21
  $region20: #{wgail_discriminator_forward.1} parent=0 // pred_region
    _
  $region21: #{wgail_discriminator_forward.1} parent=0 // pred_fallthru
    _
  // Predicated region
  $region22: #{wgail_discriminator_forward.1} parent=0 // pred_check
    _
  $region23: #{wgail_discriminator_forward.1} parent=0 // pred_check_branch
    %25 = sbr.rel (0) target = $region25
  $region24: #{wgail_discriminator_forward.1} parent=0 // pred_region
    _
  $region25: #{wgail_discriminator_forward.1} parent=0 // pred_fallthru
    _
  // Predicated region
  $region26: #{wgail_discriminator_forward.1} parent=0 // pred_check
    _
  $region27: #{wgail_discriminator_forward.1} parent=0 // pred_check_branch
    %27 = sbr.rel (0) target = $region29
  $region28: #{wgail_discriminator_forward.1} parent=0 // pred_region
    _
  $region29: #{wgail_discriminator_forward.1} parent=0 // pred_fallthru
    _
  %v29 = vld [vmem:[%s0] sm:$0xf]
  %v30 = vld [vmem:[%s1] sm:$0xf]
  %v31 = vld [vmem:[%s1 + $0x4] sm:$0xf]
  %v32 = vld [vmem:[%s1 + $0x8] sm:$0xf]
  %v33 = vld [vmem:[%s1 + $0xc] sm:$0xf]
  %v34 = vld [vmem:[%s1 + $0x10] sm:$0xf]
  %v35 = vld [vmem:[%s1 + $0x14] sm:$0xf]
  %v36 = vld [vmem:[%s1 + $0x18] sm:$0xf]
  %v37 = vld [vmem:[%s1 + $0x1c] sm:$0xf]
  %v38 = vld [vmem:[%s2] sm:$0xff]
  %v39 = vld [vmem:[%s2 + $0x8] sm:$0xff]
  %v40 = vld [vmem:[%s2 + $0x10] sm:$0xff]
  %v41 = vld [vmem:[%s2 + $0x18] sm:$0xff]
  %v42 = vld [vmem:[%s2 + $0x20] sm:$0xff]
  %v43 = vld [vmem:[%s2 + $0x28] sm:$0xff]
  %v44 = vld [vmem:[%s2 + $0x30] sm:$0xff]
  %v45 = vld [vmem:[%s2 + $0x38] sm:$0xff]
  %47 = vset.pattern.permute.xlu0 0
  %48 = vperm.xlu0 %47, %v38
  %v49 = vpop.permute.xlu0 %48
  %52 = vset.pattern.permute.xlu0 0
  %53 = vperm.xlu0 %52, %v39
  %v54 = vpop.permute.xlu0 %53
  %57 = vset.pattern.permute.xlu0 0
  %58 = vperm.xlu0 %57, %v40
  %v59 = vpop.permute.xlu0 %58
  %62 = vset.pattern.permute.xlu0 0
  %63 = vperm.xlu0 %62, %v41
  %v64 = vpop.permute.xlu0 %63
  %67 = vset.pattern.permute.xlu0 0
  %68 = vperm.xlu0 %67, %v42
  %v69 = vpop.permute.xlu0 %68
  %72 = vset.pattern.permute.xlu0 0
  %73 = vperm.xlu0 %72, %v43
  %v74 = vpop.permute.xlu0 %73
  %77 = vset.pattern.permute.xlu0 0
  %78 = vperm.xlu0 %77, %v44
  %v79 = vpop.permute.xlu0 %78
  %82 = vset.pattern.permute.xlu0 0
  %83 = vperm.xlu0 %82, %v45
  %v84 = vpop.permute.xlu0 %83
  %v94 = vunpack.c.l.b16 %v30
  %v95 = vunpack.c.l.b16 %v31
  %v96 = vunpack.c.l.b16 %v32
  %v97 = vunpack.c.l.b16 %v33
  %v98 = vunpack.c.l.b16 %v34
  %v99 = vunpack.c.l.b16 %v35
  %v100 = vunpack.c.l.b16 %v36
  %v101 = vunpack.c.l.b16 %v37
  %v102 = vpack.c.b16 %v95, %v94
  %v103 = vpack.c.b16 %v97, %v96
  %v104 = vpack.c.b16 %v99, %v98
  %v105 = vpack.c.b16 %v101, %v100
  %vm106 = vcmask 64512
  %v108 = vsel %vm106, %v102, 0
  %v111 = vsel %vm106, %v103, 0
  %v114 = vsel %vm106, %v104, 0
  %v117 = vsel %vm106, %v105, 0
  %vm119 = vcmask 1043456
  %v121 = vsel %vm119, %v29, 0
  %123 = vmatpush.bf16.msra.mxu0 0
  %124 = vmatpush.bf16.msra.mxu0 0
  %125 = vmatpush.bf16.msra.mxu0 0
  %126 = vmatpush.bf16.msra.mxu0 0
  %127 = vmatpush.bf16.msra.mxu0 0
  %128 = vmatpush.bf16.msra.mxu0 0
  %129 = vmatpush.bf16.msra.mxu0 0
  %130 = vmatpush.bf16.msra.mxu0 %v121
  %131 = vmatmul.bf16.gmra.mxu0 %v108
  %v132 = vpop.f32.mrf.mxu0
  %v133 = vadd.f32 %v49, %v132
  %v134 = vpop.f32.mrf.mxu0
  %v135 = vadd.f32 %v54, %v134
  %136 = vmatmul.bf16.gmra.mxu0 %v111
  %v137 = vpop.f32.mrf.mxu0
  %v138 = vadd.f32 %v59, %v137
  %v139 = vpop.f32.mrf.mxu0
  %v140 = vadd.f32 %v64, %v139
  %141 = vmatmul.bf16.gmra.mxu0 %v114
  %v142 = vpop.f32.mrf.mxu0
  %v143 = vadd.f32 %v69, %v142
  %v144 = vpop.f32.mrf.mxu0
  %v145 = vadd.f32 %v74, %v144
  %146 = vmatmul.bf16.gmra.mxu0 %v117
  %v147 = vpop.f32.mrf.mxu0
  %v148 = vadd.f32 %v79, %v147
  %v149 = vpop.f32.mrf.mxu0
  %v150 = vadd.f32 %v84, %v149
  %151 = vdwg.mxu0
  %v152 = vmax.f32 %v133, 0.0
  %v153 = vmax.f32 %v135, 0.0
  %v154 = vmax.f32 %v138, 0.0
  %v155 = vmax.f32 %v140, 0.0
  %v156 = vmax.f32 %v143, 0.0
  %v157 = vmax.f32 %v145, 0.0
  %v158 = vmax.f32 %v148, 0.0
  %v159 = vmax.f32 %v150, 0.0
  %v160 = vld [vmem:[%s3] sm:$0xf]
  %v161 = vld [vmem:[%s3 + $0x4] sm:$0xf]
  %v162 = vld [vmem:[%s3 + $0x8] sm:$0xf]
  %v163 = vld [vmem:[%s3 + $0xc] sm:$0xf]
  %v164 = vld [vmem:[%s3 + $0x10] sm:$0xf]
  %v165 = vld [vmem:[%s3 + $0x14] sm:$0xf]
  %v166 = vld [vmem:[%s3 + $0x18] sm:$0xf]
  %v167 = vld [vmem:[%s3 + $0x1c] sm:$0xf]
  %v168 = vpack.c.bf16 %v153, %v152
  %v169 = vpack.c.bf16 %v155, %v154
  %v170 = vpack.c.bf16 %v157, %v156
  %v171 = vpack.c.bf16 %v159, %v158
  %v172 = vld [vmem:[%s4] sm:$0xff]
  %v173 = vld [vmem:[%s4 + $0x8] sm:$0xff]
  %v174 = vld [vmem:[%s4 + $0x10] sm:$0xff]
  %v175 = vld [vmem:[%s4 + $0x18] sm:$0xff]
  %v176 = vld [vmem:[%s4 + $0x20] sm:$0xff]
  %v177 = vld [vmem:[%s4 + $0x28] sm:$0xff]
  %v178 = vld [vmem:[%s4 + $0x30] sm:$0xff]
  %v179 = vld [vmem:[%s4 + $0x38] sm:$0xff]
  %181 = vset.pattern.permute.xlu0 0
  %182 = vperm.xlu0 %181, %v172
  %v183 = vpop.permute.xlu0 %182
  %186 = vset.pattern.permute.xlu0 0
  %187 = vperm.xlu0 %186, %v173
  %v188 = vpop.permute.xlu0 %187
  %191 = vset.pattern.permute.xlu0 0
  %192 = vperm.xlu0 %191, %v174
  %v193 = vpop.permute.xlu0 %192
  %196 = vset.pattern.permute.xlu0 0
  %197 = vperm.xlu0 %196, %v175
  %v198 = vpop.permute.xlu0 %197
  %201 = vset.pattern.permute.xlu0 0
  %202 = vperm.xlu0 %201, %v176
  %v203 = vpop.permute.xlu0 %202
  %206 = vset.pattern.permute.xlu0 0
  %207 = vperm.xlu0 %206, %v177
  %v208 = vpop.permute.xlu0 %207
  %211 = vset.pattern.permute.xlu0 0
  %212 = vperm.xlu0 %211, %v178
  %v213 = vpop.permute.xlu0 %212
  %216 = vset.pattern.permute.xlu0 0
  %217 = vperm.xlu0 %216, %v179
  %v218 = vpop.permute.xlu0 %217
  %v228 = vunpack.c.l.b16 %v160
  %v229 = vunpack.c.l.b16 %v161
  %v230 = vunpack.c.l.b16 %v162
  %v231 = vunpack.c.l.b16 %v163
  %v232 = vunpack.c.l.b16 %v164
  %v233 = vunpack.c.l.b16 %v165
  %v234 = vunpack.c.l.b16 %v166
  %v235 = vunpack.c.l.b16 %v167
  %v236 = vpack.c.b16 %v229, %v228
  %v237 = vpack.c.b16 %v231, %v230
  %v238 = vpack.c.b16 %v233, %v232
  %v239 = vpack.c.b16 %v235, %v234
  %vm240 = vcmask 523264
  %v242 = vsel %vm240, %v236, 0
  %v245 = vsel %vm240, %v237, 0
  %v248 = vsel %vm240, %v238, 0
  %v251 = vsel %vm240, %v239, 0
  %253 = vmatpush.bf16.msra.mxu0 0
  %254 = vmatpush.bf16.msra.mxu0 0
  %255 = vmatpush.bf16.msra.mxu0 0
  %256 = vmatpush.bf16.msra.mxu0 0
  %257 = vmatpush.bf16.msra.mxu0 %v171
  %258 = vmatpush.bf16.msra.mxu0 %v170
  %259 = vmatpush.bf16.msra.mxu0 %v169
  %260 = vmatpush.bf16.msra.mxu0 %v168
  %261 = vmatmul.bf16.gmra.mxu0 %v242
  %v262 = vpop.f32.mrf.mxu0
  %v263 = vadd.f32 %v183, %v262
  %v264 = vpop.f32.mrf.mxu0
  %v265 = vadd.f32 %v188, %v264
  %266 = vmatmul.bf16.gmra.mxu0 %v245
  %v267 = vpop.f32.mrf.mxu0
  %v268 = vadd.f32 %v193, %v267
  %v269 = vpop.f32.mrf.mxu0
  %v270 = vadd.f32 %v198, %v269
  %271 = vmatmul.bf16.gmra.mxu0 %v248
  %v272 = vpop.f32.mrf.mxu0
  %v273 = vadd.f32 %v203, %v272
  %v274 = vpop.f32.mrf.mxu0
  %v275 = vadd.f32 %v208, %v274
  %276 = vmatmul.bf16.gmra.mxu0 %v251
  %v277 = vpop.f32.mrf.mxu0
  %v278 = vadd.f32 %v213, %v277
  %v279 = vpop.f32.mrf.mxu0
  %v280 = vadd.f32 %v218, %v279
  %281 = vdwg.mxu0
  %v282 = vmax.f32 %v263, 0.0
  %v283 = vmax.f32 %v265, 0.0
  %v284 = vmax.f32 %v268, 0.0
  %v285 = vmax.f32 %v270, 0.0
  %v286 = vmax.f32 %v273, 0.0
  %v287 = vmax.f32 %v275, 0.0
  %v288 = vmax.f32 %v278, 0.0
  %v289 = vmax.f32 %v280, 0.0
  %v290 = vld [vmem:[%s5] sm:$0xff]
  %v291 = vld [vmem:[%s5 + $0x8] sm:$0xff]
  %v292 = vld [vmem:[%s5 + $0x10] sm:$0xff]
  %v293 = vld [vmem:[%s5 + $0x18] sm:$0xff]
  %v294 = vld [vmem:[%s5 + $0x20] sm:$0xff]
  %v295 = vld [vmem:[%s5 + $0x28] sm:$0xff]
  %v296 = vld [vmem:[%s5 + $0x30] sm:$0xff]
  %v297 = vld [vmem:[%s5 + $0x38] sm:$0xff]
  %299 = vset.pattern.permute.xlu0 0
  %300 = vperm.xlu0 %299, %v290
  %v301 = vpop.permute.xlu0 %300
  %304 = vset.pattern.permute.xlu0 0
  %305 = vperm.xlu0 %304, %v291
  %v306 = vpop.permute.xlu0 %305
  %309 = vset.pattern.permute.xlu0 0
  %310 = vperm.xlu0 %309, %v292
  %v311 = vpop.permute.xlu0 %310
  %314 = vset.pattern.permute.xlu0 0
  %315 = vperm.xlu0 %314, %v293
  %v316 = vpop.permute.xlu0 %315
  %319 = vset.pattern.permute.xlu0 0
  %320 = vperm.xlu0 %319, %v294
  %v321 = vpop.permute.xlu0 %320
  %324 = vset.pattern.permute.xlu0 0
  %325 = vperm.xlu0 %324, %v295
  %v326 = vpop.permute.xlu0 %325
  %329 = vset.pattern.permute.xlu0 0
  %330 = vperm.xlu0 %329, %v296
  %v331 = vpop.permute.xlu0 %330
  %334 = vset.pattern.permute.xlu0 0
  %335 = vperm.xlu0 %334, %v297
  %v336 = vpop.permute.xlu0 %335
  %v338 = vmul.f32 %v282, %v301
  %v339 = vmul.f32 %v283, %v306
  %v340 = vmul.f32 %v284, %v311
  %v341 = vmul.f32 %v285, %v316
  %v342 = vmul.f32 %v286, %v321
  %v343 = vmul.f32 %v287, %v326
  %v344 = vmul.f32 %v288, %v331
  %v345 = vmul.f32 %v289, %v336
  %v346 = vadd.f32 %v338, %v339
  %v347 = vadd.f32 %v346, %v340
  %v348 = vadd.f32 %v347, %v341
  %v349 = vadd.f32 %v348, %v342
  %v350 = vadd.f32 %v349, %v343
  %v351 = vadd.f32 %v350, %v344
  %v352 = vadd.f32 %v351, %v345
  %v353 = vrot.slane %v352, 4
  %v354 = vadd.f32 %v352, %v353
  %v355 = vrot.slane %v354, 2
  %v356 = vadd.f32 %v354, %v355
  %v357 = vrot.slane %v356, 1
  %v358 = vadd.f32 %v356, %v357
  %v359 = vld [vmem:[#allocation2] sm:$0x1]
  %361 = vset.pattern.permute.xlu0 0
  %362 = vperm.xlu0 %361, %v359
  %v363 = vpop.permute.xlu0 %362
  %v365 = vperm.slane %v363, 0
  %v366 = vadd.f32 %v358, %v365
  %367 = vst [vmem:[%s7] sm:$0x1] %v366
  // Predicated region
  $region30: #{wgail_discriminator_forward.1} parent=0 // pred_check
    _
  $region31: #{wgail_discriminator_forward.1} parent=0 // pred_check_branch
    %369 = sbr.rel (0) target = $region33
  $region32: #{wgail_discriminator_forward.1} parent=0 // pred_region
    _
  $region33: #{wgail_discriminator_forward.1} parent=0 // pred_fallthru
    _
  // Predicated region
  $region34: #{wgail_discriminator_forward.1} parent=0 // pred_check
    _
  $region35: #{wgail_discriminator_forward.1} parent=0 // pred_check_branch
    %371 = sbr.rel (0) target = $region37
  $region36: #{wgail_discriminator_forward.1} parent=0 // pred_region
    _
  $region37: #{wgail_discriminator_forward.1} parent=0 // pred_fallthru
    _

</llo_original>
